<compile_context>
chip_gen: v7x
topology: tpu7x:2x2x1
jax: 0.10.0
libtpu: 0.0.40
codegen_flags: <defaults>
</compile_context>

<pallas_src>
import jax
import jax.numpy as jnp
import numpy as np
from jax import lax
from jax.experimental import pallas as pl
from jax.experimental.pallas import tpu as pltpu


def _round_up(x, m):
    return ((x + m - 1) // m) * m


def _largest_dividing_tile(total, cap):
    """Largest multiple of 128 that divides `total` (a multiple of 128) and is <= cap."""
    cap = max(128, (cap // 128) * 128)
    for t in range(cap, 127, -128):
        if total % t == 0:
            return t
    return 128


# --------------------------------------------------------------------------- params


def prepare_catlinear_params(weight, cat_params, embed_sizes, bias):
    """One-time parameter prep (padding / transpose), hoisted out of the forward."""
    embed_sizes = np.asarray(embed_sizes, dtype=np.int64)
    n_cat = int(embed_sizes.shape[0])

    bias = jnp.asarray(bias, jnp.float32).reshape(-1)
    weight = jnp.asarray(weight, jnp.float32)
    cat_params = jnp.asarray(cat_params, jnp.float32)

    out_size = int(bias.shape[0])
    numeric_size = int(weight.shape[1])
    total_embed = int(cat_params.shape[0])
    assert int(embed_sizes.sum()) == total_embed
    assert numeric_size > 0 and n_cat > 0, (
        "This Pallas port implements the full CatLinear path (numeric + categorical).")
    # TODO(synk): numeric-only / categorical-only CatLinear variants.

    out_pad = _round_up(out_size, 128)          # lane-dense output: full-width vst, MXU N>=128
    k_pad = _round_up(total_embed, 128)

    wT = jnp.zeros((numeric_size, out_pad), jnp.float32).at[:, :out_size].set(weight.T)
    emb = jnp.zeros((k_pad, out_pad), jnp.float32).at[:total_embed, :out_size].set(cat_params)
    bias_p = jnp.zeros((1, out_pad), jnp.float32).at[0, :out_size].set(bias)

    starts = (np.cumsum(embed_sizes) - embed_sizes).astype(np.int64)
    stops = np.cumsum(embed_sizes).astype(np.int64)
    feat_ranges = tuple((int(a), int(b)) for a, b in zip(starts, stops))
    embed_idx = jnp.asarray(starts, jnp.int32)

    return dict(
        wT=wT, emb=emb, bias=bias_p, embed_idx=embed_idx,
        out_size=out_size, out_pad=out_pad,
        numeric_size=numeric_size, n_cat=n_cat,
        total_embed=total_embed, k_pad=k_pad,
        feat_ranges=feat_ranges,
    )


# --------------------------------------------------------------------------- kernels


def _make_resident_kernel(k_chunk, n_chunks, n_cat):
    """1-D grid over batch tiles; whole (padded) embedding table resident in VMEM."""

    def kernel(num_ref, wT_ref, cat_ref, emb_ref, bias_ref, out_ref):
        # Numeric part + bias.
        out_ref[...] = bias_ref[...] + jnp.dot(
            num_ref[...], wT_ref[...], preferred_element_type=jnp.float32)

        cat = cat_ref[...]                       # (tb, n_cat) int32, already offset
        tb = cat.shape[0]

        def do_chunk(base, emb_tile):
            # Multi-hot for this K chunk: per-feature row ranges are disjoint, so
            # OR of one-hots == their sum; single cast feeding the MXU.
            col = lax.broadcasted_iota(jnp.int32, (tb, k_chunk), 1) + base
            hot = col == cat[:, 0:1]
            for j in range(1, n_cat):
                hot = jnp.logical_or(hot, col == cat[:, j:j + 1])
            out_ref[...] += jnp.dot(hot.astype(jnp.float32), emb_tile,
                                    preferred_element_type=jnp.float32)

        if n_chunks == 1:
            do_chunk(0, emb_ref[...])
        else:
            def body(c, carry):
                base = pl.multiple_of(c * k_chunk, k_chunk)
                do_chunk(base, emb_ref[pl.ds(base, k_chunk), :])
                return carry
            lax.fori_loop(0, n_chunks, body, 0)

    return kernel


def _make_stream_kernel(feat_ranges, tk):
    """2-D grid (batch 'parallel', K 'arbitrary'); table streamed in K tiles."""

    def kernel(num_ref, wT_ref, cat_ref, emb_ref, bias_ref, out_ref, hot_ref):
        k = pl.program_id(1)
        lo = k * tk

        # Numeric part + bias once per batch tile; the out block stays VMEM-resident
        # across the "arbitrary" K axis (same block index every step).
        @pl.when(k == 0)
        def _():
            out_ref[...] = bias_ref[...] + jnp.dot(
                num_ref[...], wT_ref[...], preferred_element_type=jnp.float32)

        cat = cat_ref[...]                       # (tb, n_cat) int32, already offset
        tb = cat.shape[0]
        col = lax.broadcasted_iota(jnp.int32, (tb, tk), 1) + lo

        # Per-feature compare gated by a scalar test of whether this K tile can
        # intersect the feature's static row range (scalar slot, ~free); ranges are
        # disjoint so max-accumulation yields an exact 0/1 multi-hot.
        hot_ref[...] = jnp.zeros_like(hot_ref)
        for j, (start, stop) in enumerate(feat_ranges):
            @pl.when(jnp.logical_and(start < lo + tk, stop > lo))
            def _(j=j):
                hot_ref[...] = jnp.maximum(
                    hot_ref[...], (col == cat[:, j:j + 1]).astype(jnp.float32))

        out_ref[...] += jnp.dot(hot_ref[...], emb_ref[...],
                                preferred_element_type=jnp.float32)

    return kernel


# --------------------------------------------------------------------------- forward


def cat_linear_forward(numbers, categories, params, *, tb=256, tk=None,
                       max_resident_table_bytes=6 << 20, resident_k_chunk=None):
    """CatLinear forward.  `params` comes from prepare_catlinear_params()."""
    B = numbers.shape[0]
    n_cat = params["n_cat"]
    numeric_size = params["numeric_size"]
    out_pad = params["out_pad"]
    out_size = params["out_size"]
    k_pad = params["k_pad"]

    assert numbers.shape == (B, numeric_size)
    assert categories.shape == (B, n_cat)

    f32 = jnp.float32
    numbers = jnp.asarray(numbers, f32)
    cat_shift = jnp.asarray(categories, jnp.int32) + params["embed_idx"][None, :]

    # Batch tiling: cdiv grid + Pallas ragged-tail handling (no padded batch copies).
    tb = max(8, min(_round_up(tb, 8), _round_up(B, 8)))
    if B > 8 and pl.cdiv(B, tb) < 2:
        tb = _round_up(pl.cdiv(B, 2), 8)         # >= 2 'parallel' tiles (v7x megacore)
    nb = pl.cdiv(B, tb)

    table_bytes = k_pad * out_pad * 4
    resident = table_bytes <= max_resident_table_bytes

    if resident:
        k_chunk = _largest_dividing_tile(k_pad, resident_k_chunk or 512)
        n_chunks = k_pad // k_chunk
        kernel = _make_resident_kernel(k_chunk, n_chunks, n_cat)
        grid_spec = pltpu.PrefetchScalarGridSpec(
            num_scalar_prefetch=0,
            grid=(nb,),
            in_specs=[
                pl.BlockSpec((tb, numeric_size), lambda i: (i, 0)),
                pl.BlockSpec((numeric_size, out_pad), lambda i: (0, 0)),
                pl.BlockSpec((tb, n_cat), lambda i: (i, 0)),
                # Constant index map -> the table is DMA'd to VMEM once and reused
                # across every batch tile.
                pl.BlockSpec((k_pad, out_pad), lambda i: (0, 0)),
                pl.BlockSpec((1, out_pad), lambda i: (0, 0)),
            ],
            out_specs=pl.BlockSpec((tb, out_pad), lambda i: (i, 0)),
        )
        dim_sem = ("parallel",)
        vmem_words = (2 * (k_pad * out_pad + tb * out_pad + numeric_size * out_pad
                           + tb * _round_up(numeric_size, 128)
                           + tb * _round_up(n_cat, 128) + 8 * out_pad)
                      + 4 * tb * k_chunk)
    else:
        if tk is None:
            cap = min(2048, max(256, (8 << 20) // (8 * out_pad)))
        else:
            cap = tk
        tk = _largest_dividing_tile(k_pad, cap)
        kernel = _make_stream_kernel(params["feat_ranges"], tk)
        grid_spec = pltpu.PrefetchScalarGridSpec(
            num_scalar_prefetch=0,
            grid=(nb, k_pad // tk),
            in_specs=[
                pl.BlockSpec((tb, numeric_size), lambda i, k: (i, 0)),
                pl.BlockSpec((numeric_size, out_pad), lambda i, k: (0, 0)),
                pl.BlockSpec((tb, n_cat), lambda i, k: (i, 0)),
                # Only per-K-step HBM stream.  (pipeline_mode=pl.Buffered(3) here if
                # profiling ever shows exposed DMA.)
                pl.BlockSpec((tk, out_pad), lambda i, k: (k, 0)),
                pl.BlockSpec((1, out_pad), lambda i, k: (0, 0)),
            ],
            out_specs=pl.BlockSpec((tb, out_pad), lambda i, k: (i, 0)),
            scratch_shapes=[pltpu.VMEM((tb, tk), f32)],
        )
        dim_sem = ("parallel", "arbitrary")
        vmem_words = (2 * (tk * out_pad + tb * out_pad + numeric_size * out_pad
                           + tb * _round_up(numeric_size, 128)
                           + tb * _round_up(n_cat, 128) + 8 * out_pad)
                      + 4 * tb * tk)

    vmem_limit = int(min(max(int(vmem_words * 4 * 1.25) + (2 << 20), 16 << 20), 48 << 20))

    out_padded = pl.pallas_call(
        kernel,
        out_shape=jax.ShapeDtypeStruct((B, out_pad), f32),
        grid_spec=grid_spec,
        compiler_params=pltpu.CompilerParams(
            dimension_semantics=dim_sem,
            vmem_limit_bytes=vmem_limit),
    )(numbers, params["wT"], cat_shift, params["emb"], params["bias"])

    return out_padded[:, :out_size]


# --------------------------------------------------------------------------- test


def ref_forward(numbers, categories, bias, weight, cat_params, embed_idx):
    x = bias[None, :] + numbers @ weight.T
    idx = categories + embed_idx[None, :]
    return x + cat_params[idx].sum(axis=1)


if __name__ == "__main__":
    key = jax.random.PRNGKey(0)
    k1, k2, k3, k4, k5 = jax.random.split(key, 5)

    batch = 50                       # deliberately not a multiple of the batch tile
    numeric_size = 16
    embed_sizes = np.array([80, 70, 60], dtype=np.int64)
    output_size = 4
    n_cat = len(embed_sizes)
    total_embed = int(embed_sizes.sum())

    bias = jax.random.normal(k1, (output_size,), dtype=jnp.float32)
    weight = jax.random.normal(k2, (output_size, numeric_size), dtype=jnp.float32) * 0.1
    cat_params = jax.random.normal(k3, (total_embed, output_size), dtype=jnp.float32) * 0.1
    embed_idx = jnp.asarray(np.cumsum(embed_sizes) - embed_sizes, dtype=jnp.int32)

    numbers = jax.random.normal(k4, (batch, numeric_size), dtype=jnp.float32)
    categories = jnp.stack(
        [jax.random.randint(jax.random.fold_in(k5, j), (batch,), 0, int(embed_sizes[j]),
                            dtype=jnp.int32) for j in range(n_cat)],
        axis=1)

    params = prepare_catlinear_params(weight, cat_params, embed_sizes, bias)
    expected = np.asarray(ref_forward(numbers, categories, bias, weight, cat_params,
                                      embed_idx))

    # 1) Resident-table path (default): 1-D batch grid, table DMA'd to VMEM once.
    fwd_resident = jax.jit(lambda n, c: cat_linear_forward(n, c, params, tb=32))
    out = jax.block_until_ready(fwd_resident(numbers, categories))
    np.testing.assert_allclose(np.asarray(out), expected, rtol=1e-5, atol=2e-5)

    # 2) Streaming path (large-table fallback): (2 batch tiles) x (2 K tiles),
    #    per-feature @pl.when gating exercised at the K-tile boundary.
    fwd_stream = jax.jit(lambda n, c: cat_linear_forward(
        n, c, params, tb=32, tk=128, max_resident_table_bytes=0))
    out = jax.block_until_ready(fwd_stream(numbers, categories))
    np.testing.assert_allclose(np.asarray(out), expected, rtol=1e-5, atol=2e-5)

    # 3) Resident path with in-kernel K chunking (exercises the fori_loop branch).
    fwd_chunked = jax.jit(lambda n, c: cat_linear_forward(
        n, c, params, tb=32, resident_k_chunk=128))
    out = jax.block_until_ready(fwd_chunked(numbers, categories))
    np.testing.assert_allclose(np.asarray(out), expected, rtol=1e-5, atol=2e-5)

    print("KERNEL_OK")
</pallas_src>

<mosaic_0001>
module attributes {stable_mosaic.version = 11 : i64} {
  func.func @kernel(%arg0: i32, %arg1: memref<32x16xf32, #tpu.memory_space<vmem>>, %arg2: memref<16x128xf32, #tpu.memory_space<vmem>>, %arg3: memref<32x3xi32, #tpu.memory_space<vmem>>, %arg4: memref<256x128xf32, #tpu.memory_space<vmem>>, %arg5: memref<1x128xf32, #tpu.memory_space<vmem>>, %arg6: memref<32x128xf32, #tpu.memory_space<vmem>>) attributes {dimension_semantics = [#tpu.dimension_semantics<parallel>], iteration_bounds = array<i64: 2>, scalar_prefetch = 0 : i64, scratch_operands = 0 : i64, tpu.core_type = #tpu.core_type<tc>, window_params = [{transform_indices = @transform_0, window_bounds = array<i64: 32, 16>}, {pipeline_mode = #tpu.pipeline_mode<synchronous>, transform_indices = @transform_1, window_bounds = array<i64: 16, 128>}, {transform_indices = @transform_2, window_bounds = array<i64: 32, 3>}, {pipeline_mode = #tpu.pipeline_mode<synchronous>, transform_indices = @transform_3, window_bounds = array<i64: 256, 128>}, {pipeline_mode = #tpu.pipeline_mode<synchronous>, transform_indices = @transform_4, window_bounds = array<i64: 1, 128>}, {transform_indices = @transform_5, window_bounds = array<i64: 32, 128>}]} {
    %c0 = arith.constant 0 : index
    %c0_0 = arith.constant 0 : index
    %0 = vector.load %arg5[%c0, %c0_0] : memref<1x128xf32, #tpu.memory_space<vmem>>, vector<1x128xf32>
    %c0_1 = arith.constant 0 : index
    %c0_2 = arith.constant 0 : index
    %1 = vector.load %arg1[%c0_1, %c0_2] : memref<32x16xf32, #tpu.memory_space<vmem>>, vector<32x16xf32>
    %c0_3 = arith.constant 0 : index
    %c0_4 = arith.constant 0 : index
    %2 = vector.load %arg2[%c0_3, %c0_4] : memref<16x128xf32, #tpu.memory_space<vmem>>, vector<16x128xf32>
    %cst = arith.constant dense<0.000000e+00> : vector<32x128xf32>
    %3 = tpu.matmul %1, %2, %cst {dimension_numbers = #tpu.dot_dimension_numbers<[1], [0], [0], [1], [0, 0, 1, 1], [], []>} : vector<32x16xf32>, vector<16x128xf32>, vector<32x128xf32> -> vector<32x128xf32>
    %4 = vector.broadcast %0 : vector<1x128xf32> to vector<32x128xf32>
    %5 = arith.addf %4, %3 : vector<32x128xf32>
    %c0_5 = arith.constant 0 : index
    %c0_6 = arith.constant 0 : index
    %6 = vector.load %arg6[%c0_5, %c0_6] : memref<32x128xf32, #tpu.memory_space<vmem>>, vector<32x128xf32>
    tpu.vector_store %arg6[%c0_5, %c0_6], %5 {strides = array<i32>} : memref<32x128xf32, #tpu.memory_space<vmem>>, vector<32x128xf32>,
    %c0_7 = arith.constant 0 : index
    %c0_8 = arith.constant 0 : index
    %7 = vector.load %arg3[%c0_7, %c0_8] : memref<32x3xi32, #tpu.memory_space<vmem>>, vector<32x3xi32>
    %c0_9 = arith.constant 0 : index
    %c0_10 = arith.constant 0 : index
    %8 = vector.load %arg4[%c0_9, %c0_10] : memref<256x128xf32, #tpu.memory_space<vmem>>, vector<256x128xf32>
    %9 = tpu.iota {dimensions = array<i32: 1>} : vector<32x256xi32>
    %c0_i32 = arith.constant 0 : i32
    %10 = vector.broadcast %c0_i32 : i32 to vector<32x256xi32>
    %11 = arith.addi %9, %10 : vector<32x256xi32>
    %12 = vector.extract_strided_slice %7 {offsets = [0, 0], sizes = [32, 1], strides = [1, 1]} : vector<32x3xi32> to vector<32x1xi32>
    %13 = vector.broadcast %12 : vector<32x1xi32> to vector<32x256xi32>
    %14 = arith.cmpi eq, %11, %13 : vector<32x256xi32>
    %15 = vector.extract_strided_slice %7 {offsets = [0, 1], sizes = [32, 1], strides = [1, 1]} : vector<32x3xi32> to vector<32x1xi32>
    %16 = vector.broadcast %15 : vector<32x1xi32> to vector<32x256xi32>
    %17 = arith.cmpi eq, %11, %16 : vector<32x256xi32>
    %18 = arith.ori %14, %17 : vector<32x256xi1>
    %19 = vector.extract_strided_slice %7 {offsets = [0, 2], sizes = [32, 1], strides = [1, 1]} : vector<32x3xi32> to vector<32x1xi32>
    %20 = vector.broadcast %19 : vector<32x1xi32> to vector<32x256xi32>
    %21 = arith.cmpi eq, %11, %20 : vector<32x256xi32>
    %22 = arith.ori %18, %21 : vector<32x256xi1>
    %c0_11 = arith.constant 0 : index
    %c0_12 = arith.constant 0 : index
    %23 = vector.load %arg6[%c0_11, %c0_12] : memref<32x128xf32, #tpu.memory_space<vmem>>, vector<32x128xf32>
    %24 = arith.extui %22 : vector<32x256xi1> to vector<32x256xi32>
    %25 = arith.sitofp %24 : vector<32x256xi32> to vector<32x256xf32>
    %cst_13 = arith.constant dense<0.000000e+00> : vector<32x128xf32>
    %26 = tpu.matmul %25, %8, %cst_13 {dimension_numbers = #tpu.dot_dimension_numbers<[1], [0], [0], [1], [0, 0, 1, 1], [], []>} : vector<32x256xf32>, vector<256x128xf32>, vector<32x128xf32> -> vector<32x128xf32>
    %27 = arith.addf %23, %26 : vector<32x128xf32>
    %c0_14 = arith.constant 0 : index
    %c0_15 = arith.constant 0 : index
    %28 = vector.load %arg6[%c0_14, %c0_15] : memref<32x128xf32, #tpu.memory_space<vmem>>, vector<32x128xf32>
    tpu.vector_store %arg6[%c0_14, %c0_15], %27 {strides = array<i32>} : memref<32x128xf32, #tpu.memory_space<vmem>>, vector<32x128xf32>,
    return
  }
  func.func @transform_0(%arg0: i32) -> (i32, i32) {
    %c0_i32 = arith.constant 0 : i32
    %c0_i32_0 = arith.constant 0 : i32
    return %arg0, %c0_i32 : i32, i32
  }
  func.func @transform_1(%arg0: i32) -> (i32, i32) {
    %c0_i32 = arith.constant 0 : i32
    %c0_i32_0 = arith.constant 0 : i32
    %c0_i32_1 = arith.constant 0 : i32
    return %c0_i32, %c0_i32_0 : i32, i32
  }
  func.func @transform_2(%arg0: i32) -> (i32, i32) {
    %c0_i32 = arith.constant 0 : i32
    %c0_i32_0 = arith.constant 0 : i32
    return %arg0, %c0_i32 : i32, i32
  }
  func.func @transform_3(%arg0: i32) -> (i32, i32) {
    %c0_i32 = arith.constant 0 : i32
    %c0_i32_0 = arith.constant 0 : i32
    %c0_i32_1 = arith.constant 0 : i32
    return %c0_i32, %c0_i32_0 : i32, i32
  }
  func.func @transform_4(%arg0: i32) -> (i32, i32) {
    %c0_i32 = arith.constant 0 : i32
    %c0_i32_0 = arith.constant 0 : i32
    %c0_i32_1 = arith.constant 0 : i32
    return %c0_i32, %c0_i32_0 : i32, i32
  }
  func.func @transform_5(%arg0: i32) -> (i32, i32) {
    %c0_i32 = arith.constant 0 : i32
    %c0_i32_0 = arith.constant 0 : i32
    return %arg0, %c0_i32 : i32, i32
  }
}

</mosaic_0001>

<llo_original>
// kernel: _lambda_.1
$region0: #{_lambda_.1}
  #allocation0 [shape = 'u32[]', space=smem, size = 0x4, offset = 0x4, fixed_abs, tag = 'smem constant byte address 0x4 - core index']
  #allocation1 [shape = 'u32[144,128]{1,0:T(1,128)}', space=vmem, size = 0x12000, scoped, tag = 'internal scratch']
  %s0 = inlined_call_operand.vmem [shape: f32[50,16], index: 0, kind: input, shape index: {}]
  %s1 = inlined_call_operand.hbm [shape: f32[16,128], index: 1, kind: input, shape index: {}]
  %s2 = inlined_call_operand.vmem [shape: s32[50,3], index: 2, kind: input, shape index: {}]
  %s3 = inlined_call_operand.vmem [shape: f32[256,128], index: 3, kind: input, shape index: {}]
  %s4 = inlined_call_operand.vmem [shape: f32[1,128], index: 4, kind: input, shape index: {}]
  %s5 = inlined_call_operand.vmem [shape: f32[50,128], index: 5, kind: output, shape index: {}]
  %s6 = sld [smem:[#allocation0]]
  $region105: #{_lambda_.1} parent=0
    _
  %s8 = ssub.s32 1, %s6
  %s9 = scalar_select 0, %s8, %s6
  $region1: #{_lambda_.1} parent=0
    #allocation2 [shape = 'u8[8192]{0}', space=vmem, size = 0x2000, scoped, tag = 'input window, operand 1, single buffered']
    #allocation3 [shape = 's32[2]{0}', space=sflag, size = 0x8, scoped, tag = 'scoped memory for _lambda_.1']
    #allocation4 [shape = 'u8[32768]{0}', space=vmem, size = 0x8000, scoped, tag = 'output window, operand 0']
    %10 = vsyncpa [#allocation3], 0
    loop: start=0, step=1, limit=4
    $region2: #{_lambda_.1} parent=1 // loop_pre_header
      _
    $region3: #{_lambda_.1} parent=1 // loop_header
      %s12 = sphi 0, %s16
      %p13 = scmp.ge.s32.totalorder %s12, 4
      %s22 = sphi 0, %s24
      %s25 = sphi 0, %s22
      %s26 = sphi 0, %s25
      %s42 = sphi 0, %s26
      %s46 = sphi 0, %s46
      %s48 = sphi 0, %s46
      %s49 = sphi 0, %s48
      %s63 = sphi 0, %s49
      %s69 = sphi 0, %s71
      %s72 = sphi 0, %s69
      %s73 = sphi 0, %s72
      %s89 = sphi 0, %s73
      %s93 = sphi 0, %s93
      %s95 = sphi 0, %s93
      %s96 = sphi 0, %s95
      %s110 = sphi 0, %s96
      %s114 = sphi 0, %s114
      %s116 = sphi 0, %s114
      %s117 = sphi 0, %s116
      %s131 = sphi 0, %s117
      %s137 = sphi 0, %s139
      %s140 = sphi 0, %s137
      %s141 = sphi 0, %s140
      %s157 = sphi 0, %s141
    $region4: #{_lambda_.1} parent=1 // loop_header_branch
      %15 = sbr.rel (%p13) target = $region8
    $region5: #{_lambda_.1} parent=1 // loop_body
      %s17 = ssub.s32 %s12, 1
      %s18 = ssub.s32 %s12, 2
      %s19 = sadd.s32 %s12, 1
      %s20 = ssub.s32 %s12, %s19
      %p21 = scmp.eq.s32.totalorder %s20, 0
      %s23 = sadd.s32 %s22, 1
      %s24 = scalar_select %p21, %s22, %s23
      %p27 = pneg %p21
      %p28 = scmp.eq.s32.totalorder %s12, 1
      %p29 = por %p27, %p28
      %p30 = scmp.ne.s32.totalorder %s22, %s25
      %p31 = scmp.eq.s32.totalorder %s12, 0
      %p32 = por %p30, %p31
      %p33 = scmp.ne.s32.totalorder %s22, %s25
      %p34 = scmp.eq.s32.totalorder %s17, 1
      %p35 = por %p33, %p34
      %p36 = scmp.ne.s32.totalorder %s25, %s26
      %p37 = scmp.eq.s32.totalorder %s17, 0
      %p38 = por %p36, %p37
      %p39 = scmp.ne.s32.totalorder %s25, %s26
      %p40 = scmp.eq.s32.totalorder %s18, 1
      %p41 = por %p39, %p40
      %p43 = scmp.ne.s32.totalorder %s26, %s42
      %p44 = scmp.eq.s32.totalorder %s18, 0
      %p45 = por %p43, %p44
      %s47 = sadd.s32 %s46, 1
      %p50 = scmp.eq.s32.totalorder %s12, 1
      %p51 = scmp.ne.s32.totalorder %s46, %s48
      %p52 = scmp.eq.s32.totalorder %s12, 0
      %p53 = por %p51, %p52
      %p54 = scmp.ne.s32.totalorder %s46, %s48
      %p55 = scmp.eq.s32.totalorder %s17, 1
      %p56 = por %p54, %p55
      %p57 = scmp.ne.s32.totalorder %s48, %s49
      %p58 = scmp.eq.s32.totalorder %s17, 0
      %p59 = por %p57, %p58
      %p60 = scmp.ne.s32.totalorder %s48, %s49
      %p61 = scmp.eq.s32.totalorder %s18, 1
      %p62 = por %p60, %p61
      %p64 = scmp.ne.s32.totalorder %s49, %s63
      %p65 = scmp.eq.s32.totalorder %s18, 0
      %p66 = por %p64, %p65
      %s67 = ssub.s32 %s12, %s19
      %p68 = scmp.eq.s32.totalorder %s67, 0
      %s70 = sadd.s32 %s69, 1
      %s71 = scalar_select %p68, %s69, %s70
      %p74 = pneg %p68
      %p75 = scmp.eq.s32.totalorder %s12, 1
      %p76 = por %p74, %p75
      %p77 = scmp.ne.s32.totalorder %s69, %s72
      %p78 = scmp.eq.s32.totalorder %s12, 0
      %p79 = por %p77, %p78
      %p80 = scmp.ne.s32.totalorder %s69, %s72
      %p81 = scmp.eq.s32.totalorder %s17, 1
      %p82 = por %p80, %p81
      %p83 = scmp.ne.s32.totalorder %s72, %s73
      %p84 = scmp.eq.s32.totalorder %s17, 0
      %p85 = por %p83, %p84
      %p86 = scmp.ne.s32.totalorder %s72, %s73
      %p87 = scmp.eq.s32.totalorder %s18, 1
      %p88 = por %p86, %p87
      %p90 = scmp.ne.s32.totalorder %s73, %s89
      %p91 = scmp.eq.s32.totalorder %s18, 0
      %p92 = por %p90, %p91
      %s94 = sadd.s32 %s93, 1
      %p97 = scmp.eq.s32.totalorder %s12, 1
      %p98 = scmp.ne.s32.totalorder %s93, %s95
      %p99 = scmp.eq.s32.totalorder %s12, 0
      %p100 = por %p98, %p99
      %p101 = scmp.ne.s32.totalorder %s93, %s95
      %p102 = scmp.eq.s32.totalorder %s17, 1
      %p103 = por %p101, %p102
      %p104 = scmp.ne.s32.totalorder %s95, %s96
      %p105 = scmp.eq.s32.totalorder %s17, 0
      %p106 = por %p104, %p105
      %p107 = scmp.ne.s32.totalorder %s95, %s96
      %p108 = scmp.eq.s32.totalorder %s18, 1
      %p109 = por %p107, %p108
      %p111 = scmp.ne.s32.totalorder %s96, %s110
      %p112 = scmp.eq.s32.totalorder %s18, 0
      %p113 = por %p111, %p112
      %s115 = sadd.s32 %s114, 1
      %p118 = scmp.eq.s32.totalorder %s12, 1
      %p119 = scmp.ne.s32.totalorder %s114, %s116
      %p120 = scmp.eq.s32.totalorder %s12, 0
      %p121 = por %p119, %p120
      %p122 = scmp.ne.s32.totalorder %s114, %s116
      %p123 = scmp.eq.s32.totalorder %s17, 1
      %p124 = por %p122, %p123
      %p125 = scmp.ne.s32.totalorder %s116, %s117
      %p126 = scmp.eq.s32.totalorder %s17, 0
      %p127 = por %p125, %p126
      %p128 = scmp.ne.s32.totalorder %s116, %s117
      %p129 = scmp.eq.s32.totalorder %s18, 1
      %p130 = por %p128, %p129
      %p132 = scmp.ne.s32.totalorder %s117, %s131
      %p133 = scmp.eq.s32.totalorder %s18, 0
      %p134 = por %p132, %p133
      %s135 = ssub.s32 %s12, %s19
      %p136 = scmp.eq.s32.totalorder %s135, 0
      %s138 = sadd.s32 %s137, 1
      %s139 = scalar_select %p136, %s137, %s138
      %p142 = pneg %p136
      %p143 = scmp.eq.s32.totalorder %s12, 1
      %p144 = por %p142, %p143
      %p145 = scmp.ne.s32.totalorder %s137, %s140
      %p146 = scmp.eq.s32.totalorder %s12, 0
      %p147 = por %p145, %p146
      %p148 = scmp.ne.s32.totalorder %s137, %s140
      %p149 = scmp.eq.s32.totalorder %s17, 1
      %p150 = por %p148, %p149
      %p151 = scmp.ne.s32.totalorder %s140, %s141
      %p152 = scmp.eq.s32.totalorder %s17, 0
      %p153 = por %p151, %p152
      %p154 = scmp.ne.s32.totalorder %s140, %s141
      %p155 = scmp.eq.s32.totalorder %s18, 1
      %p156 = por %p154, %p155
      %p158 = scmp.ne.s32.totalorder %s141, %s157
      %p159 = scmp.eq.s32.totalorder %s18, 0
      %p160 = por %p158, %p159
      %p161 = scmp.le.s32.totalorder 1, %s12
      %p162 = scmp.lt.s32.totalorder %s12, 3
      %p163 = pnand %p161, %p162
      %p164 = pneg %p163
      // Predicated region
      $region9: #{_lambda_.1} parent=5 // pred_check
        _
      $region10: #{_lambda_.1} parent=5 // pred_check_branch
        %166 = sbr.rel (%p163) target = $region12
      $region11: #{_lambda_.1} parent=5 // pred_region
        %s167 = ssub.s32 %s12, 1
        // Predicated region
        $region13: #{_lambda_.1} parent=11 // pred_check
          %p168 = pneg %p59
        $region14: #{_lambda_.1} parent=11 // pred_check_branch
          %170 = sbr.rel (%p168) target = $region16
        $region15: #{_lambda_.1} parent=11 // pred_region
          %s172 = ssub.s32 256, 256
          %173 = vsyncadd [#allocation3], %s172
          %s174 = sshll.u32 [#allocation2], 4
          %s175 = int_to_ptr.vmem [resolvable:$true] %s174
          %180 = dma.hbm_to_vmem [thread:$0]  %s1, 256, %s175, [#allocation3], 128, 128, 8
        $region16: #{_lambda_.1} parent=11 // pred_fallthru
          _
        // Predicated region
        $region17: #{_lambda_.1} parent=11 // pred_check
          %p181 = pneg %p106
        $region18: #{_lambda_.1} parent=11 // pred_check_branch
          %183 = sbr.rel (%p181) target = $region20
        $region19: #{_lambda_.1} parent=11 // pred_region
          _
        $region20: #{_lambda_.1} parent=11 // pred_fallthru
          _
        // Predicated region
        $region21: #{_lambda_.1} parent=11 // pred_check
          %p184 = pneg %p127
        $region22: #{_lambda_.1} parent=11 // pred_check_branch
          %186 = sbr.rel (%p184) target = $region24
        $region23: #{_lambda_.1} parent=11 // pred_region
          _
        $region24: #{_lambda_.1} parent=11 // pred_fallthru
          _
      $region12: #{_lambda_.1} parent=5 // pred_fallthru
        _
      %p187 = scmp.lt.s32.totalorder %s12, 2
      // Predicated region
      $region25: #{_lambda_.1} parent=5 // pred_check
        %p188 = pneg %p187
      $region26: #{_lambda_.1} parent=5 // pred_check_branch
        %190 = sbr.rel (%p188) target = $region28
      $region27: #{_lambda_.1} parent=5 // pred_region
        // Predicated region
        $region29: #{_lambda_.1} parent=27 // pred_check
          %p191 = pneg %p32
        $region30: #{_lambda_.1} parent=27 // pred_check_branch
          %193 = sbr.rel (%p191) target = $region32
        $region31: #{_lambda_.1} parent=27 // pred_region
          %s194 = smul.u32 4, %s12
          %s195 = ssub.s32 7, %s194
          %p196 = scmp.lt.s32.totalorder %s195, 4
          %s197 = scalar_select %p196, %s195, 4
          %s198 = smul.u32 128, %s197
          %p199 = scmp.lt.s32.totalorder %s194, 6
          %s200 = scalar_select %p199, %s194, 6
          %s201 = smul.addr %s200, 8
          %s202 = scalar_lea.vmem %s0, %s201
          %s203 = smul.u32 4, %s12
          %s204 = ssub.s32 7, %s203
          %p205 = scmp.lt.s32.totalorder %s204, 4
          %s206 = scalar_select %p205, %s204, 4
          %s207 = smul.u32 128, %s206
        $region32: #{_lambda_.1} parent=27 // pred_fallthru
          _
        // Predicated region
        $region33: #{_lambda_.1} parent=27 // pred_check
          %p208 = pneg %p79
        $region34: #{_lambda_.1} parent=27 // pred_check_branch
          %210 = sbr.rel (%p208) target = $region36
        $region35: #{_lambda_.1} parent=27 // pred_region
          %s211 = smul.u32 4, %s12
          %s212 = ssub.s32 7, %s211
          %p213 = scmp.lt.s32.totalorder %s212, 4
          %s214 = scalar_select %p213, %s212, 4
          %s215 = smul.u32 128, %s214
          %p216 = scmp.lt.s32.totalorder %s211, 6
          %s217 = scalar_select %p216, %s211, 6
          %s218 = smul.addr %s217, 8
          %s219 = scalar_lea.vmem %s2, %s218
          %s220 = smul.u32 4, %s12
          %s221 = ssub.s32 7, %s220
          %p222 = scmp.lt.s32.totalorder %s221, 4
          %s223 = scalar_select %p222, %s221, 4
          %s224 = smul.u32 128, %s223
        $region36: #{_lambda_.1} parent=27 // pred_fallthru
          _
      $region28: #{_lambda_.1} parent=5 // pred_fallthru
        _
      %p225 = scmp.le.s32.totalorder 1, %s12
      %p226 = scmp.lt.s32.totalorder %s12, 3
      %p227 = pnand %p225, %p226
      %p228 = pneg %p227
      // Predicated region
      $region37: #{_lambda_.1} parent=5 // pred_check
        _
      $region38: #{_lambda_.1} parent=5 // pred_check_branch
        %230 = sbr.rel (%p227) target = $region40
      $region39: #{_lambda_.1} parent=5 // pred_region
        %s231 = ssub.s32 %s12, 1
        // Predicated region
        $region41: #{_lambda_.1} parent=39 // pred_check
          %p232 = pneg %p59
        $region42: #{_lambda_.1} parent=39 // pred_check_branch
          %234 = sbr.rel (%p232) target = $region44
        $region43: #{_lambda_.1} parent=39 // pred_region
          %235 = dma.done [#allocation3], 256
        $region44: #{_lambda_.1} parent=39 // pred_fallthru
          _
        %s236 = smul.u32 4, %s17
        %s237 = ssub.s32 7, %s236
        %p238 = scmp.lt.s32.totalorder %s237, 4
        %s239 = scalar_select %p238, %s237, 4
        %s240 = smul.u32 128, %s239
        %p241 = scmp.lt.s32.totalorder %s236, 6
        %s242 = scalar_select %p241, %s236, 6
        %s243 = smul.addr %s242, 8
        %s244 = scalar_lea.vmem %s0, %s243
        %p245 = pneg %p38
        %p246 = pneg %p35
        %p247 = pneg %p59
        %p248 = pneg %p56
        %s249 = smul.u32 4, %s17
        %s250 = ssub.s32 7, %s249
        %p251 = scmp.lt.s32.totalorder %s250, 4
        %s252 = scalar_select %p251, %s250, 4
        %s253 = smul.u32 128, %s252
        %p254 = scmp.lt.s32.totalorder %s249, 6
        %s255 = scalar_select %p254, %s249, 6
        %s256 = smul.addr %s255, 8
        %s257 = scalar_lea.vmem %s2, %s256
        %p258 = pneg %p85
        %p259 = pneg %p82
        %p260 = pneg %p106
        %p261 = pneg %p103
        %p262 = pneg %p127
        %p263 = pneg %p124
        %p264 = pneg %p153
        %p265 = pneg %p150
        %s266 = sand.u32 %s140, 1
        %s267 = sand.u32 %s140, 1
        %s268 = smul.addr %s267, 32
        %s269 = scalar_lea.vmem [#allocation4], %s268
        %s270 = smul.u32 4, %s17
        %s271 = ssub.s32 7, %s270
        %p272 = scmp.lt.s32.totalorder %s271, 4
        %s273 = scalar_select %p272, %s271, 4
        %s274 = smul.u32 128, %s273
        %p275 = scmp.lt.s32.totalorder %s270, 6
        %s276 = scalar_select %p275, %s270, 6
        %s277 = smul.addr %s276, 8
        %s278 = scalar_lea.vmem %s0, %s277
        %s279 = smul.u32 4, %s17
        %s280 = ssub.s32 7, %s279
        %p281 = scmp.lt.s32.totalorder %s280, 4
        %s282 = scalar_select %p281, %s280, 4
        %s283 = smul.u32 128, %s282
        %s284 = smul.u32 4, %s17
        %s285 = ssub.s32 7, %s284
        %p286 = scmp.lt.s32.totalorder %s285, 4
        %s287 = scalar_select %p286, %s285, 4
        %s288 = smul.u32 128, %s287
        %p289 = scmp.lt.s32.totalorder %s284, 6
        %s290 = scalar_select %p289, %s284, 6
        %s291 = smul.addr %s290, 8
        %s292 = scalar_lea.vmem %s2, %s291
        %s293 = smul.u32 4, %s17
        %s294 = ssub.s32 7, %s293
        %p295 = scmp.lt.s32.totalorder %s294, 4
        %s296 = scalar_select %p295, %s294, 4
        %s297 = smul.u32 128, %s296
        %s298 = smul.u32 4, %s17
        %s299 = ssub.s32 7, %s298
        %p300 = scmp.lt.s32.totalorder %s299, 4
        %s301 = scalar_select %p300, %s299, 4
        %s302 = smul.u32 128, %s301
        %v303 = vld [vmem:[%s4] sm:$0x1]
        %v304 = vld [vmem:[%s278] sm:$0xff]
        %v305 = vld [vmem:[%s278 + $0x8] sm:$0xff]
        %v306 = vld [vmem:[%s278 + $0x10] sm:$0xff]
        %v307 = vld [vmem:[%s278 + $0x18] sm:$0xff]
        %v308 = vld [vmem:[#allocation2] sm:$0xff]
        %v309 = vld [vmem:[#allocation2 + $0x8] sm:$0xff]
        %vm310 = vcmask 130048
        %v312 = vsel %vm310, %v304, 0
        %v315 = vsel %vm310, %v305, 0
        %v318 = vsel %vm310, %v306, 0
        %v321 = vsel %vm310, %v307, 0
        %323 = vmatprep.subr.mxu0 0.0
        %324 = vmatpush1.msra.mxu0 %v308
        %325 = vmatprep.subr.mxu0 0.0
        %326 = vmatpush1.msra.mxu0 %v309
        %327 = vmatprep.subr.mxu0 0.0
        %328 = vmatpush1.msra.mxu0 0.0
        %329 = vmatprep.subr.mxu0 0.0
        %330 = vmatpush1.msra.mxu0 0.0
        %331 = vmatprep.subr.mxu0 0.0
        %332 = vmatpush1.msra.mxu0 0.0
        %333 = vmatprep.subr.mxu0 0.0
        %334 = vmatpush1.msra.mxu0 0.0
        %335 = vmatprep.subr.mxu0 0.0
        %336 = vmatpush1.msra.mxu0 0.0
        %337 = vmatprep.subr.mxu0 0.0
        %338 = vmatpush1.msra.mxu0 0.0
        %339 = vmatprep.subr.mxu0 0.0
        %340 = vmatpush1.msra.mxu0 0.0
        %341 = vmatprep.subr.mxu0 0.0
        %342 = vmatpush1.msra.mxu0 0.0
        %343 = vmatprep.subr.mxu0 0.0
        %344 = vmatpush1.msra.mxu0 0.0
        %345 = vmatprep.subr.mxu0 0.0
        %346 = vmatpush1.msra.mxu0 0.0
        %347 = vmatprep.subr.mxu0 0.0
        %348 = vmatpush1.msra.mxu0 0.0
        %349 = vmatprep.subr.mxu0 0.0
        %350 = vmatpush1.msra.mxu0 0.0
        %351 = vmatprep.subr.mxu0 0.0
        %352 = vmatpush1.msra.mxu0 0.0
        %353 = vmatprep.subr.mxu0 0.0
        %354 = vmatpush1.msra.mxu0 0.0
        %355 = vmatprep.subr.mxu0 0.0
        %356 = vmatpush1.msra.mxu0 0.0
        %357 = vmatprep.subr.mxu0 0.0
        %358 = vmatpush1.msra.mxu0 0.0
        %359 = vmatprep.subr.mxu0 0.0
        %360 = vmatpush1.msra.mxu0 0.0
        %361 = vmatprep.subr.mxu0 0.0
        %362 = vmatpush1.msra.mxu0 0.0
        %363 = vmatprep.subr.mxu0 0.0
        %364 = vmatpush1.msra.mxu0 0.0
        %365 = vmatprep.subr.mxu0 0.0
        %366 = vmatpush1.msra.mxu0 0.0
        %367 = vmatprep.subr.mxu0 0.0
        %368 = vmatpush1.msra.mxu0 0.0
        %369 = vmatprep.subr.mxu0 0.0
        %370 = vmatpush1.msra.mxu0 0.0
        %371 = vmatprep.subr.mxu0 0.0
        %372 = vmatpush1.msra.mxu0 0.0
        %373 = vmatprep.subr.mxu0 0.0
        %374 = vmatpush1.msra.mxu0 0.0
        %375 = vmatprep.subr.mxu0 0.0
        %376 = vmatpush1.msra.mxu0 0.0
        %377 = vmatprep.subr.mxu0 0.0
        %378 = vmatpush1.msra.mxu0 0.0
        %379 = vmatprep.subr.mxu0 0.0
        %380 = vmatpush1.msra.mxu0 0.0
        %381 = vmatprep.subr.mxu0 0.0
        %382 = vmatpush1.msra.mxu0 0.0
        %383 = vmatprep.subr.mxu0 0.0
        %384 = vmatpush1.msra.mxu0 0.0
        %385 = vmatprep.subr.mxu0 0.0
        %386 = vmatpush1.msra.mxu0 0.0
        %387 = vmatprep.mubr.f32.mxu0 0.0
        %388 = vmatmul.mubr.f32.gmra.mrb[0].mxu0 %v312
        %v389 = vpop.f32.mrb[0].mxu0
        %v390 = vadd.f32 0.0, %v389
        %v391 = vpop.f32.mrb[0].mxu0
        %392 = vmatprep.mubr.f32.mxu0 0.0
        %393 = vmatmul.mubr.f32.gmra.mrb[0].mxu0 %v315
        %v394 = vpop.f32.mrb[0].mxu0
        %v395 = vadd.f32 0.0, %v394
        %v396 = vpop.f32.mrb[0].mxu0
        %397 = vmatprep.mubr.f32.mxu0 0.0
        %398 = vmatmul.mubr.f32.gmra.mrb[0].mxu0 %v318
        %v399 = vpop.f32.mrb[0].mxu0
        %v400 = vadd.f32 0.0, %v399
        %v401 = vpop.f32.mrb[0].mxu0
        %402 = vmatprep.mubr.f32.mxu0 0.0
        %403 = vmatmul.mubr.f32.gmra.mrb[0].mxu0 %v321
        %v404 = vpop.f32.mrb[0].mxu0
        %v405 = vadd.f32 0.0, %v404
        %v406 = vpop.f32.mrb[0].mxu0
        %407 = vdwg.mxu0
        %v409 = vlaneseq
        %v410 = vshrl.u32 %v409, 7
        %v411 = vsub.s32 0, %v410
        %v412 = vrot.slane %v303, %v411
        %v414 = vadd.f32 %v412, %v390
        %v415 = vadd.f32 %v412, %v395
        %v416 = vadd.f32 %v412, %v400
        %v417 = vadd.f32 %v412, %v405
        %418 = vst [vmem:[%s269] sm:$0xff] %v414
        %419 = vst [vmem:[%s269 + $0x8] sm:$0xff] %v415
        %420 = vst [vmem:[%s269 + $0x10] sm:$0xff] %v416
        %421 = vst [vmem:[%s269 + $0x18] sm:$0xff] %v417
        %v422 = vld [vmem:[%s292] sm:$0xff]
        %v423 = vld [vmem:[%s292 + $0x8] sm:$0xff]
        %v424 = vld [vmem:[%s292 + $0x10] sm:$0xff]
        %v425 = vld [vmem:[%s292 + $0x18] sm:$0xff]
        %v426 = vld [vmem:[%s3] sm:$0xff]
        %v427 = vld [vmem:[%s3 + $0x8] sm:$0xff]
        %v428 = vld [vmem:[%s3 + $0x10] sm:$0xff]
        %v429 = vld [vmem:[%s3 + $0x18] sm:$0xff]
        %v430 = vld [vmem:[%s3 + $0x20] sm:$0xff]
        %v431 = vld [vmem:[%s3 + $0x28] sm:$0xff]
        %v432 = vld [vmem:[%s3 + $0x30] sm:$0xff]
        %v433 = vld [vmem:[%s3 + $0x38] sm:$0xff]
        %v434 = vld [vmem:[%s3 + $0x40] sm:$0xff]
        %v435 = vld [vmem:[%s3 + $0x48] sm:$0xff]
        %v436 = vld [vmem:[%s3 + $0x50] sm:$0xff]
        %v437 = vld [vmem:[%s3 + $0x58] sm:$0xff]
        %v438 = vld [vmem:[%s3 + $0x60] sm:$0xff]
        %v439 = vld [vmem:[%s3 + $0x68] sm:$0xff]
        %v440 = vld [vmem:[%s3 + $0x70] sm:$0xff]
        %v441 = vld [vmem:[%s3 + $0x78] sm:$0xff]
        %v442 = vld [vmem:[%s3 + $0x80] sm:$0xff]
        %v443 = vld [vmem:[%s3 + $0x88] sm:$0xff]
        %v444 = vld [vmem:[%s3 + $0x90] sm:$0xff]
        %v445 = vld [vmem:[%s3 + $0x98] sm:$0xff]
        %v446 = vld [vmem:[%s3 + $0xa0] sm:$0xff]
        %v447 = vld [vmem:[%s3 + $0xa8] sm:$0xff]
        %v448 = vld [vmem:[%s3 + $0xb0] sm:$0xff]
        %v449 = vld [vmem:[%s3 + $0xb8] sm:$0xff]
        %v450 = vld [vmem:[%s3 + $0xc0] sm:$0xff]
        %v451 = vld [vmem:[%s3 + $0xc8] sm:$0xff]
        %v452 = vld [vmem:[%s3 + $0xd0] sm:$0xff]
        %v453 = vld [vmem:[%s3 + $0xd8] sm:$0xff]
        %v454 = vld [vmem:[%s3 + $0xe0] sm:$0xff]
        %v455 = vld [vmem:[%s3 + $0xe8] sm:$0xff]
        %v456 = vld [vmem:[%s3 + $0xf0] sm:$0xff]
        %v457 = vld [vmem:[%s3 + $0xf8] sm:$0xff]
        %v458 = vlaneseq
        %v459 = vand.u32 %v458, 127
        %v460 = vadd.s32 %v459, 128
        %461 = vset.pattern.permute.xlu0 0
        %462 = vperm.xlu0 %461, %v422
        %v463 = vpop.permute.xlu0 %462
        %464 = vset.pattern.permute.xlu0 0
        %465 = vperm.xlu0 %464, %v423
        %v466 = vpop.permute.xlu0 %465
        %467 = vset.pattern.permute.xlu0 0
        %468 = vperm.xlu0 %467, %v424
        %v469 = vpop.permute.xlu0 %468
        %470 = vset.pattern.permute.xlu0 0
        %471 = vperm.xlu0 %470, %v425
        %v472 = vpop.permute.xlu0 %471
        %vm473 = vcmp.eq.s32.totalorder %v459, %v463
        %vm474 = vcmp.eq.s32.totalorder %v460, %v463
        %vm475 = vcmp.eq.s32.totalorder %v459, %v466
        %vm476 = vcmp.eq.s32.totalorder %v460, %v466
        %vm477 = vcmp.eq.s32.totalorder %v459, %v469
        %vm478 = vcmp.eq.s32.totalorder %v460, %v469
        %vm479 = vcmp.eq.s32.totalorder %v459, %v472
        %vm480 = vcmp.eq.s32.totalorder %v460, %v472
        %481 = vset.pattern.permute.xlu0 1
        %482 = vperm.xlu0 %481, %v422
        %v483 = vpop.permute.xlu0 %482
        %484 = vset.pattern.permute.xlu0 1
        %485 = vperm.xlu0 %484, %v423
        %v486 = vpop.permute.xlu0 %485
        %487 = vset.pattern.permute.xlu0 1
        %488 = vperm.xlu0 %487, %v424
        %v489 = vpop.permute.xlu0 %488
        %490 = vset.pattern.permute.xlu0 1
        %491 = vperm.xlu0 %490, %v425
        %v492 = vpop.permute.xlu0 %491
        %vm493 = vcmp.eq.s32.totalorder %v459, %v483
        %vm494 = vcmp.eq.s32.totalorder %v460, %v483
        %vm495 = vcmp.eq.s32.totalorder %v459, %v486
        %vm496 = vcmp.eq.s32.totalorder %v460, %v486
        %vm497 = vcmp.eq.s32.totalorder %v459, %v489
        %vm498 = vcmp.eq.s32.totalorder %v460, %v489
        %vm499 = vcmp.eq.s32.totalorder %v459, %v492
        %vm500 = vcmp.eq.s32.totalorder %v460, %v492
        %vm501 = vmor %vm473, %vm493
        %vm502 = vmor %vm474, %vm494
        %vm503 = vmor %vm475, %vm495
        %vm504 = vmor %vm476, %vm496
        %vm505 = vmor %vm477, %vm497
        %vm506 = vmor %vm478, %vm498
        %vm507 = vmor %vm479, %vm499
        %vm508 = vmor %vm480, %vm500
        %509 = vset.pattern.permute.xlu0 2
        %510 = vperm.xlu0 %509, %v422
        %v511 = vpop.permute.xlu0 %510
        %512 = vset.pattern.permute.xlu0 2
        %513 = vperm.xlu0 %512, %v423
        %v514 = vpop.permute.xlu0 %513
        %515 = vset.pattern.permute.xlu0 2
        %516 = vperm.xlu0 %515, %v424
        %v517 = vpop.permute.xlu0 %516
        %518 = vset.pattern.permute.xlu0 2
        %519 = vperm.xlu0 %518, %v425
        %v520 = vpop.permute.xlu0 %519
        %vm521 = vcmp.eq.s32.totalorder %v459, %v511
        %vm522 = vcmp.eq.s32.totalorder %v460, %v511
        %vm523 = vcmp.eq.s32.totalorder %v459, %v514
        %vm524 = vcmp.eq.s32.totalorder %v460, %v514
        %vm525 = vcmp.eq.s32.totalorder %v459, %v517
        %vm526 = vcmp.eq.s32.totalorder %v460, %v517
        %vm527 = vcmp.eq.s32.totalorder %v459, %v520
        %vm528 = vcmp.eq.s32.totalorder %v460, %v520
        %vm529 = vmor %vm501, %vm521
        %vm530 = vmor %vm502, %vm522
        %vm531 = vmor %vm503, %vm523
        %vm532 = vmor %vm504, %vm524
        %vm533 = vmor %vm505, %vm525
        %vm534 = vmor %vm506, %vm526
        %vm535 = vmor %vm507, %vm527
        %vm536 = vmor %vm508, %vm528
        %v537 = vld [vmem:[%s269] sm:$0xff]
        %v538 = vld [vmem:[%s269 + $0x8] sm:$0xff]
        %v539 = vld [vmem:[%s269 + $0x10] sm:$0xff]
        %v540 = vld [vmem:[%s269 + $0x18] sm:$0xff]
        %v541 = vsel %vm529, 1, 0
        %v542 = vsel %vm530, 1, 0
        %v543 = vsel %vm531, 1, 0
        %v544 = vsel %vm532, 1, 0
        %v545 = vsel %vm533, 1, 0
        %v546 = vsel %vm534, 1, 0
        %v547 = vsel %vm535, 1, 0
        %v548 = vsel %vm536, 1, 0
        %v549 = vcvt.s32.f32 %v541
        %v550 = vcvt.s32.f32 %v542
        %v551 = vcvt.s32.f32 %v543
        %v552 = vcvt.s32.f32 %v544
        %v553 = vcvt.s32.f32 %v545
        %v554 = vcvt.s32.f32 %v546
        %v555 = vcvt.s32.f32 %v547
        %v556 = vcvt.s32.f32 %v548
        %557 = vmatprep.subr.mxu0 0.0
        %558 = vmatpush1.msra.mxu0 %v426
        %559 = vmatprep.subr.mxu0 0.0
        %560 = vmatpush1.msra.mxu0 %v427
        %561 = vmatprep.subr.mxu0 0.0
        %562 = vmatpush1.msra.mxu0 %v428
        %563 = vmatprep.subr.mxu0 0.0
        %564 = vmatpush1.msra.mxu0 %v429
        %565 = vmatprep.subr.mxu0 0.0
        %566 = vmatpush1.msra.mxu0 %v430
        %567 = vmatprep.subr.mxu0 0.0
        %568 = vmatpush1.msra.mxu0 %v431
        %569 = vmatprep.subr.mxu0 0.0
        %570 = vmatpush1.msra.mxu0 %v432
        %571 = vmatprep.subr.mxu0 0.0
        %572 = vmatpush1.msra.mxu0 %v433
        %573 = vmatprep.subr.mxu0 0.0
        %574 = vmatpush1.msra.mxu0 %v434
        %575 = vmatprep.subr.mxu0 0.0
        %576 = vmatpush1.msra.mxu0 %v435
        %577 = vmatprep.subr.mxu0 0.0
        %578 = vmatpush1.msra.mxu0 %v436
        %579 = vmatprep.subr.mxu0 0.0
        %580 = vmatpush1.msra.mxu0 %v437
        %581 = vmatprep.subr.mxu0 0.0
        %582 = vmatpush1.msra.mxu0 %v438
        %583 = vmatprep.subr.mxu0 0.0
        %584 = vmatpush1.msra.mxu0 %v439
        %585 = vmatprep.subr.mxu0 0.0
        %586 = vmatpush1.msra.mxu0 %v440
        %587 = vmatprep.subr.mxu0 0.0
        %588 = vmatpush1.msra.mxu0 %v441
        %589 = vmatprep.subr.mxu0 0.0
        %590 = vmatpush1.msra.mxu0 %v442
        %591 = vmatprep.subr.mxu0 0.0
        %592 = vmatpush1.msra.mxu0 %v443
        %593 = vmatprep.subr.mxu0 0.0
        %594 = vmatpush1.msra.mxu0 %v444
        %595 = vmatprep.subr.mxu0 0.0
        %596 = vmatpush1.msra.mxu0 %v445
        %597 = vmatprep.subr.mxu0 0.0
        %598 = vmatpush1.msra.mxu0 %v446
        %599 = vmatprep.subr.mxu0 0.0
        %600 = vmatpush1.msra.mxu0 %v447
        %601 = vmatprep.subr.mxu0 0.0
        %602 = vmatpush1.msra.mxu0 %v448
        %603 = vmatprep.subr.mxu0 0.0
        %604 = vmatpush1.msra.mxu0 %v449
        %605 = vmatprep.subr.mxu0 0.0
        %606 = vmatpush1.msra.mxu0 %v450
        %607 = vmatprep.subr.mxu0 0.0
        %608 = vmatpush1.msra.mxu0 %v451
        %609 = vmatprep.subr.mxu0 0.0
        %610 = vmatpush1.msra.mxu0 %v452
        %611 = vmatprep.subr.mxu0 0.0
        %612 = vmatpush1.msra.mxu0 %v453
        %613 = vmatprep.subr.mxu0 0.0
        %614 = vmatpush1.msra.mxu0 %v454
        %615 = vmatprep.subr.mxu0 0.0
        %616 = vmatpush1.msra.mxu0 %v455
        %617 = vmatprep.subr.mxu0 0.0
        %618 = vmatpush1.msra.mxu0 %v456
        %619 = vmatprep.subr.mxu0 0.0
        %620 = vmatpush1.msra.mxu0 %v457
        %621 = vmatprep.mubr.f32.mxu0 %v550
        %622 = vmatmul.mubr.f32.gmra.mrb[0].mxu0 %v549
        %v623 = vpop.f32.mrb[0].mxu0
        %v624 = vadd.f32 0.0, %v623
        %v625 = vpop.f32.mrb[0].mxu0
        %626 = vmatprep.mubr.f32.mxu0 %v552
        %627 = vmatmul.mubr.f32.gmra.mrb[0].mxu0 %v551
        %v628 = vpop.f32.mrb[0].mxu0
        %v629 = vadd.f32 0.0, %v628
        %v630 = vpop.f32.mrb[0].mxu0
        %631 = vmatprep.mubr.f32.mxu0 %v554
        %632 = vmatmul.mubr.f32.gmra.mrb[0].mxu0 %v553
        %v633 = vpop.f32.mrb[0].mxu0
        %v634 = vadd.f32 0.0, %v633
        %v635 = vpop.f32.mrb[0].mxu0
        %636 = vmatprep.mubr.f32.mxu0 %v556
        %637 = vmatmul.mubr.f32.gmra.mrb[0].mxu0 %v555
        %v638 = vpop.f32.mrb[0].mxu0
        %v639 = vadd.f32 0.0, %v638
        %v640 = vpop.f32.mrb[0].mxu0
        %641 = vdwg.mxu0
        %v642 = vadd.f32 %v537, %v624
        %v643 = vadd.f32 %v538, %v629
        %v644 = vadd.f32 %v539, %v634
        %v645 = vadd.f32 %v540, %v639
        %646 = vst [vmem:[%s269] sm:$0xff] %v642
        %647 = vst [vmem:[%s269 + $0x8] sm:$0xff] %v643
        %648 = vst [vmem:[%s269 + $0x10] sm:$0xff] %v644
        %649 = vst [vmem:[%s269 + $0x18] sm:$0xff] %v645
        %s650 = sand.u32 %s140, 1
        %s651 = sand.u32 %s140, 1
        %s652 = smul.addr %s651, 32
        %s653 = scalar_lea.vmem [#allocation4], %s652
        // Predicated region
        $region45: #{_lambda_.1} parent=39 // pred_check
          %p654 = pneg %p150
        $region46: #{_lambda_.1} parent=39 // pred_check_branch
          %656 = sbr.rel (%p654) target = $region48
        $region47: #{_lambda_.1} parent=39 // pred_region
          %s657 = smul.u32 4, %s17
          %s658 = ssub.s32 7, %s657
          %p659 = scmp.lt.s32.totalorder %s658, 4
          %s660 = scalar_select %p659, %s658, 4
          %s661 = smul.u32 128, %s660
          %p662 = scmp.ne.s32.totalorder 0, %s661
          %s663 = smul.addr %s657, 8
          %s664 = scalar_lea.vmem %s5, %s663
          // Predicated region
          $region49: #{_lambda_.1} parent=47 // pred_check
            %p665 = pneg %p662
          $region50: #{_lambda_.1} parent=47 // pred_check_branch
            %667 = sbr.rel (%p665) target = $region52
          $region51: #{_lambda_.1} parent=47 // pred_region
            // Predicated region
            $region53: #{_lambda_.1} parent=51 // pred_check
              _
            $region54: #{_lambda_.1} parent=51 // pred_check_branch
              %669 = sbr.rel (0) target = $region56
            $region55: #{_lambda_.1} parent=51 // pred_region
              // Predicated region
              $region75: #{_lambda_.1} parent=55 // pred_check
                _
              $region76: #{_lambda_.1} parent=55 // pred_check_branch
                %724 = sbr.rel (0) target = $region78
              $region77: #{_lambda_.1} parent=55 // pred_region
                %s725 = sshrl.u32 %s660, 2
                // While loop
                $region79: #{_lambda_.1} parent=77 // loop_pre_header
                  _
                $region80: #{_lambda_.1} parent=77 // loop_header
                  %s727 = sphi 0, %s729
                  %p728 = scmp.ge.s32.totalorder %s727, %s725
                  %s732 = sphi 0, %s745
                  %s733 = sphi %s653, %s748
                  %s734 = sphi %s664, %s749
                $region81: #{_lambda_.1} parent=77 // loop_header_branch
                  %731 = sbr.rel (%p728) target = $region85
                $region82: #{_lambda_.1} parent=77 // loop_body
                  %v735 = vld [vmem:[%s733] sm:$0xff]
                  %736 = vst [vmem:[%s734] sm:$0xff] %v735
                  %v737 = vld [vmem:[%s733 + $0x8] sm:$0xff]
                  %738 = vst [vmem:[%s734 + $0x8] sm:$0xff] %v737
                  %v739 = vld [vmem:[%s733 + $0x10] sm:$0xff]
                  %740 = vst [vmem:[%s734 + $0x10] sm:$0xff] %v739
                  %v741 = vld [vmem:[%s733 + $0x18] sm:$0xff]
                  %742 = vst [vmem:[%s734 + $0x18] sm:$0xff] %v741
                  %s743 = sadd.s32 1, %s732
                  %p744 = scmp.ge.s32.totalorder %s743, %s725
                  %s745 = scalar_select %p744, 0, %s743
                  %s746 = smul.u32 %s745, 32
                  %s747 = smul.u32 %s745, 32
                  %s748 = scalar_lea.vmem %s653, %s746 [#allocation4]
                  %s749 = scalar_lea.vmem %s664, %s747
                $region83: #{_lambda_.1} parent=77 // loop_footer
                  %s729 = sadd.s32 %s727, 1
                $region84: #{_lambda_.1} parent=77 // loop_footer_branch
                  %726 = sbr.rel target = $region80
                $region85: #{_lambda_.1} parent=77 // loop_exit
                  _
                %s750 = sshrl.u32 %s660, 2
                %s751 = sand.u32 %s660, 3
                %s752 = smul.u32 %s750, 4
                %s753 = smul.u32 8, %s752
                %s754 = scalar_lea.vmem %s653, %s753 [#allocation4]
                %s755 = smul.u32 8, %s752
                %s756 = scalar_lea.vmem %s664, %s755
                // While loop
                $region86: #{_lambda_.1} parent=77 // loop_pre_header
                  _
                $region87: #{_lambda_.1} parent=77 // loop_header
                  %s758 = sphi 0, %s760
                  %p759 = scmp.ge.s32.totalorder %s758, %s751
                  %s763 = sphi 0, %s770
                  %s764 = sphi %s754, %s773
                  %s765 = sphi %s756, %s774
                $region88: #{_lambda_.1} parent=77 // loop_header_branch
                  %762 = sbr.rel (%p759) target = $region92
                $region89: #{_lambda_.1} parent=77 // loop_body
                  %v766 = vld [vmem:[%s764] sm:$0xff]
                  %767 = vst [vmem:[%s765] sm:$0xff] %v766
                  %s768 = sadd.s32 1, %s763
                  %p769 = scmp.ge.s32.totalorder %s768, %s751
                  %s770 = scalar_select %p769, 0, %s768
                  %s771 = smul.u32 %s770, 8
                  %s772 = smul.u32 %s770, 8
                  %s773 = scalar_lea.vmem %s754, %s771 [#allocation4]
                  %s774 = scalar_lea.vmem %s756, %s772
                $region90: #{_lambda_.1} parent=77 // loop_footer
                  %s760 = sadd.s32 %s758, 1
                $region91: #{_lambda_.1} parent=77 // loop_footer_branch
                  %757 = sbr.rel target = $region87
                $region92: #{_lambda_.1} parent=77 // loop_exit
                  _
              $region78: #{_lambda_.1} parent=55 // pred_fallthru
                _
              // Predicated region
              $region93: #{_lambda_.1} parent=55 // pred_check
                _
              $region94: #{_lambda_.1} parent=55 // pred_check_branch
                %776 = sbr.rel target = $region96
              $region95: #{_lambda_.1} parent=55 // pred_region
                _
              $region96: #{_lambda_.1} parent=55 // pred_fallthru
                _
            $region56: #{_lambda_.1} parent=51 // pred_fallthru
              _
            // Predicated region
            $region57: #{_lambda_.1} parent=51 // pred_check
              _
            $region58: #{_lambda_.1} parent=51 // pred_check_branch
              %671 = sbr.rel target = $region60
            $region59: #{_lambda_.1} parent=51 // pred_region
              %s673 = sshrl.u32 %s660, 2
              // While loop
              $region61: #{_lambda_.1} parent=59 // loop_pre_header
                _
              $region62: #{_lambda_.1} parent=59 // loop_header
                %s675 = sphi 0, %s677
                %p676 = scmp.ge.s32.totalorder %s675, %s673
                %s680 = sphi 0, %s693
                %s681 = sphi %s653, %s696
                %s682 = sphi %s664, %s697
              $region63: #{_lambda_.1} parent=59 // loop_header_branch
                %679 = sbr.rel (%p676) target = $region67
              $region64: #{_lambda_.1} parent=59 // loop_body
                %v683 = vld [vmem:[%s681] sm:$0xff]
                %684 = vst [vmem:[%s682] sm:$0xff] %v683
                %v685 = vld [vmem:[%s681 + $0x8] sm:$0xff]
                %686 = vst [vmem:[%s682 + $0x8] sm:$0xff] %v685
                %v687 = vld [vmem:[%s681 + $0x10] sm:$0xff]
                %688 = vst [vmem:[%s682 + $0x10] sm:$0xff] %v687
                %v689 = vld [vmem:[%s681 + $0x18] sm:$0xff]
                %690 = vst [vmem:[%s682 + $0x18] sm:$0xff] %v689
                %s691 = sadd.s32 1, %s680
                %p692 = scmp.ge.s32.totalorder %s691, %s673
                %s693 = scalar_select %p692, 0, %s691
                %s694 = smul.u32 %s693, 32
                %s695 = smul.u32 %s693, 32
                %s696 = scalar_lea.vmem %s653, %s694 [#allocation4]
                %s697 = scalar_lea.vmem %s664, %s695
              $region65: #{_lambda_.1} parent=59 // loop_footer
                %s677 = sadd.s32 %s675, 1
              $region66: #{_lambda_.1} parent=59 // loop_footer_branch
                %674 = sbr.rel target = $region62
              $region67: #{_lambda_.1} parent=59 // loop_exit
                _
              %s698 = sshrl.u32 %s660, 2
              %s699 = sand.u32 %s660, 3
              %s700 = smul.u32 %s698, 4
              %s701 = smul.u32 8, %s700
              %s702 = scalar_lea.vmem %s653, %s701 [#allocation4]
              %s703 = smul.u32 8, %s700
              %s704 = scalar_lea.vmem %s664, %s703
              // While loop
              $region68: #{_lambda_.1} parent=59 // loop_pre_header
                _
              $region69: #{_lambda_.1} parent=59 // loop_header
                %s706 = sphi 0, %s708
                %p707 = scmp.ge.s32.totalorder %s706, %s699
                %s711 = sphi 0, %s718
                %s712 = sphi %s702, %s721
                %s713 = sphi %s704, %s722
              $region70: #{_lambda_.1} parent=59 // loop_header_branch
                %710 = sbr.rel (%p707) target = $region74
              $region71: #{_lambda_.1} parent=59 // loop_body
                %v714 = vld [vmem:[%s712] sm:$0xff]
                %715 = vst [vmem:[%s713] sm:$0xff] %v714
                %s716 = sadd.s32 1, %s711
                %p717 = scmp.ge.s32.totalorder %s716, %s699
                %s718 = scalar_select %p717, 0, %s716
                %s719 = smul.u32 %s718, 8
                %s720 = smul.u32 %s718, 8
                %s721 = scalar_lea.vmem %s702, %s719 [#allocation4]
                %s722 = scalar_lea.vmem %s704, %s720
              $region72: #{_lambda_.1} parent=59 // loop_footer
                %s708 = sadd.s32 %s706, 1
              $region73: #{_lambda_.1} parent=59 // loop_footer_branch
                %705 = sbr.rel target = $region69
              $region74: #{_lambda_.1} parent=59 // loop_exit
                _
            $region60: #{_lambda_.1} parent=51 // pred_fallthru
              _
          $region52: #{_lambda_.1} parent=47 // pred_fallthru
            _
          %777 = vnop
        $region48: #{_lambda_.1} parent=39 // pred_fallthru
          _
      $region40: #{_lambda_.1} parent=5 // pred_fallthru
        _
      %p778 = scmp.le.s32.totalorder 2, %s12
      // Predicated region
      $region97: #{_lambda_.1} parent=5 // pred_check
        %p779 = pneg %p778
      $region98: #{_lambda_.1} parent=5 // pred_check_branch
        %781 = sbr.rel (%p779) target = $region100
      $region99: #{_lambda_.1} parent=5 // pred_region
        %s782 = ssub.s32 %s12, 2
        // Predicated region
        $region101: #{_lambda_.1} parent=99 // pred_check
          %p783 = pneg %p156
        $region102: #{_lambda_.1} parent=99 // pred_check_branch
          %785 = sbr.rel (%p783) target = $region104
        $region103: #{_lambda_.1} parent=99 // pred_region
          %s786 = sand.u32 %s141, 1
          %s787 = sand.u32 %s141, 1
          %s788 = smul.addr %s787, 32
          %s789 = scalar_lea.vmem [#allocation4], %s788
        $region104: #{_lambda_.1} parent=99 // pred_fallthru
          _
      $region100: #{_lambda_.1} parent=5 // pred_fallthru
        _
    $region6: #{_lambda_.1} parent=1 // loop_footer
      %s16 = sadd.s32 1, %s12
    $region7: #{_lambda_.1} parent=1 // loop_footer_branch
      %11 = sbr.rel target = $region3
    $region8: #{_lambda_.1} parent=1 // loop_exit
      _
    %790 = vsyncpa [#allocation3], 1
    %s791 = scalar_lea.sflag [#allocation3], 1
    %792 = vsyncpa %s791, 1

</llo_original>
